<compile_context>
chip_gen: v5e
topology: v5e:2x2
jax: 0.10.0
libtpu: 0.0.40
codegen_flags: <defaults>
</compile_context>

<pallas_src>
import math
import functools

import jax
import jax.numpy as jnp
import numpy as np
from jax.experimental import pallas as pl
from jax.experimental.pallas import tpu as pltpu

D_MODEL = 64
MAX_LEN = 5000        # module default
P_DROP = 0.1


def make_pe_table(max_len: int, d_model: int) -> jnp.ndarray:
    """Deterministic sinusoidal PE buffer, identical to the PyTorch __init__."""
    position = jnp.arange(max_len, dtype=jnp.float32)[:, None]            # (L, 1)
    div_term = jnp.exp(
        jnp.arange(0, d_model, 2, dtype=jnp.float32) * (-math.log(10000.0) / d_model)
    )                                                                      # (D/2,)
    pe = jnp.zeros((max_len, d_model), dtype=jnp.float32)
    pe = pe.at[:, 0::2].set(jnp.sin(position * div_term))
    pe = pe.at[:, 1::2].set(jnp.cos(position * div_term))
    return pe                                                              # (L, D)


def _pick_row_tile(seq_len: int, row_bytes: int) -> int:
    """Rows per tile: 2x double-buffered (x + out) tiles + pe tile must fit a
    conservative 8 MiB budget (headroom under v5e's 16 MiB scoped default and
    v7x's 32 MiB)."""
    budget = 8 * 1024 * 1024
    cap = budget // (5 * row_bytes)
    cap = max(8, (cap // 8) * 8)       # keep the sublane dim a multiple of 8
    cap = min(cap, 1024)               # 512-1024 rows already near HBM roofline
    return seq_len if seq_len <= cap else cap


def _pe_dropout_kernel(seed_ref, x_ref, pe_ref, o_ref, *,
                       batch, p_drop, apply_dropout):
    # x_ref/o_ref: (TS, B*D) VMEM tiles (lane-dense), pe_ref: (TS, D) VMEM tile,
    # seed_ref: (1,) int32 in SMEM (scalar prefetch).
    pe_b = jnp.tile(pe_ref[...], (1, batch))          # (TS, B*D) broadcast over batch
    y = x_ref[...] + pe_b

    if apply_dropout:
        ts, bd = y.shape
        # Counter-based hash PRNG: unique global flat index per element, mixed
        # with the user seed, then a 32-bit avalanche (lowbias32). Each grid
        # step covers distinct indices => independent masks per tile.
        row0 = pl.program_id(0) * ts
        rows = jax.lax.broadcasted_iota(jnp.int32, (ts, bd), 0) + row0
        cols = jax.lax.broadcasted_iota(jnp.int32, (ts, bd), 1)
        flat = (rows * bd + cols).astype(jnp.uint32)

        seed = seed_ref[0].astype(jnp.uint32)
        h = flat * jnp.uint32(0x9E3779B1) + (seed * jnp.uint32(0x85EBCA77)
                                             + jnp.uint32(1))
        h = h ^ (h >> 16)
        h = h * jnp.uint32(0x7FEB352D)
        h = h ^ (h >> 15)
        h = h * jnp.uint32(0x846CA68B)
        h = h ^ (h >> 16)

        r24 = h >> 8                                   # 24-bit uniform
        thr = min(int(round(p_drop * (1 << 24))), (1 << 24) - 1)
        keep = r24 >= jnp.uint32(thr)                  # keep with prob (1 - p)
        scale = jnp.float32(1.0 / (1.0 - p_drop))
        y = jnp.where(keep, y * scale, jnp.zeros_like(y))

    o_ref[...] = y.astype(o_ref.dtype)


def positional_encoding(x, pe_table, *, p_drop=P_DROP, train=False, seed=0):
    """x: (S, B, D) float32. Returns dropout(x + pe[:S]) like the PyTorch forward."""
    S, B, D = x.shape
    BD = B * D

    x2 = x.reshape(S, BD)                              # fold batch into lanes
    pe_slice = pe_table[:S]                            # (S, D)
    seed_arr = jnp.array([seed], dtype=jnp.int32)

    ts = _pick_row_tile(S, BD * 4)
    grid = (pl.cdiv(S, ts),)

    kernel = functools.partial(
        _pe_dropout_kernel, batch=B, p_drop=p_drop, apply_dropout=train
    )
    y2 = pl.pallas_call(
        kernel,
        out_shape=jax.ShapeDtypeStruct((S, BD), x.dtype),
        grid_spec=pltpu.PrefetchScalarGridSpec(
            num_scalar_prefetch=1,                     # seed lands in SMEM
            grid=grid,
            in_specs=[
                pl.BlockSpec((ts, BD), lambda i, seed_ref: (i, 0)),
                pl.BlockSpec((ts, D), lambda i, seed_ref: (i, 0)),
            ],
            out_specs=pl.BlockSpec((ts, BD), lambda i, seed_ref: (i, 0)),
        ),
        compiler_params=pltpu.CompilerParams(
            dimension_semantics=("parallel",)          # shards across TCs on v7x
        ),
    )(seed_arr, x2, pe_slice)

    return y2.reshape(S, B, D)


if __name__ == "__main__":
    S, B, D = 8, 2, D_MODEL                            # seq=8, batch=2, d_model=64
    key = jax.random.PRNGKey(0)
    x = jax.random.normal(key, (S, B, D), dtype=jnp.float32)

    pe_table = make_pe_table(MAX_LEN, D_MODEL)

    # Eval-mode forward (dropout is identity): verify against reference.
    y_eval = jax.block_until_ready(positional_encoding(x, pe_table, train=False))
    ref = x + pe_table[:S][:, None, :]
    np.testing.assert_allclose(np.asarray(y_eval), np.asarray(ref),
                               rtol=1e-6, atol=1e-6)

    # Training-mode forward (dropout with deterministic in-kernel hash PRNG).
    # Note: the mask differs from torch's RNG stream; the semantics
    # (Bernoulli keep prob 1-p, 1/(1-p) rescale of kept values) match.
    y_train = jax.block_until_ready(
        positional_encoding(x, pe_table, train=True, seed=1234)
    )
    assert y_train.shape == (S, B, D)
    yt = np.asarray(y_train)
    rf = np.asarray(ref)
    drop_frac = float(np.mean(yt == 0.0))
    assert 0.0 < drop_frac < 0.4, f"unexpected drop fraction {drop_frac}"
    kept = (yt != 0.0) & (np.abs(rf) > 1e-6)
    np.testing.assert_allclose(yt[kept], rf[kept] / (1.0 - P_DROP),
                               rtol=1e-5, atol=1e-6)

    print("KERNEL_OK")
</pallas_src>

<mosaic_0001>
module attributes {stable_mosaic.version = 11 : i64} {
  func.func @_pe_dropout_kernel(%arg0: i32, %arg1: memref<1xi32, #tpu.memory_space<smem>>, %arg2: memref<8x128xf32, #tpu.memory_space<vmem>>, %arg3: memref<8x64xf32, #tpu.memory_space<vmem>>, %arg4: memref<8x128xf32, #tpu.memory_space<vmem>>) attributes {dimension_semantics = [#tpu.dimension_semantics<parallel>], iteration_bounds = array<i64: 1>, scalar_prefetch = 1 : i64, scratch_operands = 0 : i64, tpu.core_type = #tpu.core_type<tc>, window_params = [{transform_indices = @transform_0, window_bounds = array<i64: 8, 128>}, {transform_indices = @transform_1, window_bounds = array<i64: 8, 64>}, {transform_indices = @transform_2, window_bounds = array<i64: 8, 128>}]} {
    %c0 = arith.constant 0 : index
    %c0_0 = arith.constant 0 : index
    %0 = vector.load %arg3[%c0, %c0_0] : memref<8x64xf32, #tpu.memory_space<vmem>>, vector<8x64xf32>
    %1 = tpu.concatenate %0, %0 in 1 : vector<8x64xf32>, vector<8x64xf32> -> vector<8x128xf32>
    %c0_1 = arith.constant 0 : index
    %c0_2 = arith.constant 0 : index
    %2 = vector.load %arg2[%c0_1, %c0_2] : memref<8x128xf32, #tpu.memory_space<vmem>>, vector<8x128xf32>
    %3 = arith.addf %2, %1 : vector<8x128xf32>
    %c0_3 = arith.constant 0 : index
    %c0_4 = arith.constant 0 : index
    %4 = vector.load %arg4[%c0_3, %c0_4] : memref<8x128xf32, #tpu.memory_space<vmem>>, vector<8x128xf32>
    tpu.vector_store %arg4[%c0_3, %c0_4], %3 {strides = array<i32>} : memref<8x128xf32, #tpu.memory_space<vmem>>, vector<8x128xf32>,
    return
  }
  func.func @transform_0(%arg0: i32, %arg1: memref<1xi32, #tpu.memory_space<smem>>) -> (i32, i32) {
    %c0_i32 = arith.constant 0 : i32
    %c0_i32_0 = arith.constant 0 : i32
    return %arg0, %c0_i32 : i32, i32
  }
  func.func @transform_1(%arg0: i32, %arg1: memref<1xi32, #tpu.memory_space<smem>>) -> (i32, i32) {
    %c0_i32 = arith.constant 0 : i32
    %c0_i32_0 = arith.constant 0 : i32
    return %arg0, %c0_i32 : i32, i32
  }
  func.func @transform_2(%arg0: i32, %arg1: memref<1xi32, #tpu.memory_space<smem>>) -> (i32, i32) {
    %c0_i32 = arith.constant 0 : i32
    %c0_i32_0 = arith.constant 0 : i32
    return %arg0, %c0_i32 : i32, i32
  }
}

</mosaic_0001>

<llo_original>
// kernel: tpu_custom_call.1
$region0: #{tpu_custom_call.1}
  #allocation0 [shape = 'u32[]', space=smem, size = 0x4, offset = 0x4, fixed_abs, tag = 'smem constant byte address 0x4 - core index']
  #allocation1 [shape = 'u32[72,128]{1,0:T(1,128)}', space=vmem, size = 0x9000, scoped, tag = 'internal scratch']
  #allocation2 [shape = 's32[1]{0}', space=sflag, size = 0x4, scoped, tag = 'scoped memory for tpu_custom_call.1']
  #allocation3 [shape = 's32[1]{0:T(128)S(6)}', space=smem, size = 0x200, scoped, tag = 'prefetched SMEM operand 0']
  %s0 = inlined_call_operand.<no memory space> [shape: s32[1], index: 0, kind: input, shape index: {}]
  %s1 = inlined_call_operand.hbm [shape: f32[8,128], index: 1, kind: input, shape index: {}]
  %s2 = inlined_call_operand.hbm [shape: f32[8,64], index: 2, kind: input, shape index: {}]
  %s3 = inlined_call_operand.hbm [shape: f32[8,128], index: 3, kind: output, shape index: {}]
  %s4 = sld [smem:[#allocation0]]
  $region26: #{tpu_custom_call.1} parent=0
    _
  %s6 = ssub.s32 1, %s4
  %s7 = scalar_select 0, %s6, %s4
  %8 = sst [smem:[#allocation3]] %s0
  $region1: #{tpu_custom_call.1} parent=0
    #allocation4 [shape = 'u8[4096]{0}', space=vmem, size = 0x1000, scoped, tag = 'input window, operand 1, single buffered']
    #allocation5 [shape = 's32[1]{0}', space=sflag, size = 0x4, scoped, tag = 'scoped memory for tpu_custom_call.1']
    #allocation6 [shape = 's32[1]{0}', space=sflag, size = 0x4, scoped, tag = 'scoped memory for tpu_custom_call.1']
    #allocation7 [shape = 'u8[4096]{0}', space=vmem, size = 0x1000, scoped, tag = 'input window, operand 2, single buffered']
    #allocation8 [shape = 's32[1]{0}', space=sflag, size = 0x4, scoped, tag = 'scoped memory for tpu_custom_call.1']
    #allocation9 [shape = 'u8[4096]{0}', space=vmem, size = 0x1000, scoped, tag = 'output window, operand 0, single buffered']
    %9 = vsyncpa [#allocation5], 0
    %10 = vsyncpa [#allocation8], 0
    %11 = vsyncpa [#allocation6], 0
    // Predicated region
    $region2: #{tpu_custom_call.1} parent=1 // pred_check
      _
    $region3: #{tpu_custom_call.1} parent=1 // pred_check_branch
      %13 = sbr.rel (0) target = $region5
    $region4: #{tpu_custom_call.1} parent=1 // pred_region
      %15 = vsyncadd [#allocation5], 0
      %s17 = sshll.u32 %s1, 4
      %s18 = int_to_ptr.hbm [resolvable:$true] %s17
      %s19 = sshll.u32 [#allocation4], 4
      %s20 = int_to_ptr.vmem [resolvable:$true] %s19
      %22 = dma.hbm_to_vmem [thread:$0]  %s18, 128, %s20, [#allocation5]
    $region5: #{tpu_custom_call.1} parent=1 // pred_fallthru
      _
    // Predicated region
    $region6: #{tpu_custom_call.1} parent=1 // pred_check
      _
    $region7: #{tpu_custom_call.1} parent=1 // pred_check_branch
      %24 = sbr.rel (0) target = $region9
    $region8: #{tpu_custom_call.1} parent=1 // pred_region
      %26 = vsyncadd [#allocation8], 0
      %s28 = sshll.u32 %s2, 4
      %s29 = int_to_ptr.hbm [resolvable:$true] %s28
      %s30 = sshll.u32 [#allocation7], 4
      %s31 = int_to_ptr.vmem [resolvable:$true] %s30
      %33 = dma.hbm_to_vmem [thread:$0]  %s29, 128, %s31, [#allocation8]
    $region9: #{tpu_custom_call.1} parent=1 // pred_fallthru
      _
    // Predicated region
    $region10: #{tpu_custom_call.1} parent=1 // pred_check
      _
    $region11: #{tpu_custom_call.1} parent=1 // pred_check_branch
      %35 = sbr.rel (0) target = $region13
    $region12: #{tpu_custom_call.1} parent=1 // pred_region
      %37 = dma.done [#allocation5], 128
    $region13: #{tpu_custom_call.1} parent=1 // pred_fallthru
      _
    // Predicated region
    $region14: #{tpu_custom_call.1} parent=1 // pred_check
      _
    $region15: #{tpu_custom_call.1} parent=1 // pred_check_branch
      %39 = sbr.rel (0) target = $region17
    $region16: #{tpu_custom_call.1} parent=1 // pred_region
      %41 = dma.done [#allocation8], 128
    $region17: #{tpu_custom_call.1} parent=1 // pred_fallthru
      _
    %v42 = vld [vmem:[#allocation7] sm:$0xff]
    %44 = vrot.lane.b32.xlu0 %v42, 64
    %v45 = vpop.permute.xlu0 %44
    %vm47 = vcmask 523264
    %v48 = vsel %vm47, %v42, %v45
    %v49 = vld [vmem:[#allocation4] sm:$0xff]
    %v50 = vadd.f32 %v49, %v48
    %51 = vst [vmem:[#allocation9] sm:$0xff] %v50
    // Predicated region
    $region18: #{tpu_custom_call.1} parent=1 // pred_check
      _
    $region19: #{tpu_custom_call.1} parent=1 // pred_check_branch
      %53 = sbr.rel (0) target = $region21
    $region20: #{tpu_custom_call.1} parent=1 // pred_region
      %55 = vsyncadd [#allocation6], 0
      %s57 = sshll.u32 [#allocation9], 4
      %s58 = int_to_ptr.vmem [resolvable:$true] %s57
      %s59 = sshll.u32 %s3, 4
      %s60 = int_to_ptr.hbm [resolvable:$true] %s59
      %62 = dma.vmem_to_hbm [thread:$0]  %s58, 128, %s60, [#allocation6]
    $region21: #{tpu_custom_call.1} parent=1 // pred_fallthru
      _
    // Predicated region
    $region22: #{tpu_custom_call.1} parent=1 // pred_check
      _
    $region23: #{tpu_custom_call.1} parent=1 // pred_check_branch
      %64 = sbr.rel (0) target = $region25
    $region24: #{tpu_custom_call.1} parent=1 // pred_region
      %66 = dma.done [#allocation6], 128
    $region25: #{tpu_custom_call.1} parent=1 // pred_fallthru
      _
    %67 = vsyncpa [#allocation5], 1
    %68 = vsyncpa [#allocation8], 1
    %69 = vsyncpa [#allocation6], 1

</llo_original>
